<compile_context>
chip_gen: v7x
topology: tpu7x:2x2x1
jax: 0.10.0
libtpu: 0.0.40
codegen_flags: <defaults>
</compile_context>

<pallas_src>
import functools

import jax
import jax.numpy as jnp
from jax import lax
from jax.experimental import pallas as pl
from jax.experimental.pallas import tpu as pltpu


def _residual_conv1d_kernel(x_ref, w1_ref, b1_ref, w2_ref, b2_ref, w3_ref, b3_ref,
                            o_ref, *, seq_len):
    lanes = x_ref.shape[-1]  # = b_tile * seq_len (batch folded into lanes)

    # Hoisted boundary masks on the folded (batch*seq) lane axis: zero the
    # column that was shifted in across a sequence boundary (conv padding=1).
    pos = lax.broadcasted_iota(jnp.int32, (1, lanes), 1) % seq_len
    keep_left = (pos >= 1).astype(jnp.float32)               # kills x[l-1] at l == 0
    keep_right = (pos <= seq_len - 2).astype(jnp.float32)    # kills x[l+1] at l == L-1

    def conv_k3(x, w_ref, b_ref):
        # x: (Cin, lanes) f32, w_ref: (Cout, 3*Cin) bf16, b_ref: (Cout, 1) f32.
        x_left = pltpu.roll(x, shift=1, axis=1) * keep_left            # col j holds x[j-1]
        x_right = pltpu.roll(x, shift=lanes - 1, axis=1) * keep_right  # col j holds x[j+1]
        stack = jnp.concatenate([x_left, x, x_right], axis=0)          # (3*Cin, lanes)
        # Single batched MXU matmul for the whole block: bf16 in, f32 accumulate.
        y = jnp.dot(w_ref[...], stack.astype(jnp.bfloat16),
                    preferred_element_type=jnp.float32)                # (Cout, lanes)
        return y + b_ref[...]

    x = x_ref[...].astype(jnp.float32)                                  # (C1, lanes)
    out1 = jnp.maximum(conv_k3(x, w1_ref, b1_ref), 0.0)                 # (C2, lanes)
    out2 = jnp.maximum(conv_k3(out1, w2_ref, b2_ref), 0.0) + out1       # (C2, lanes)
    out3 = jnp.maximum(conv_k3(out2, w3_ref, b3_ref), 0.0)              # (C3, lanes)
    o_ref[...] = out3.astype(o_ref.dtype)


def _pick_batch_tile(n, l, c_max):
    """Largest divisor of n whose block fits a ~8 MiB activation budget; the
    block lane width (d*l) must be a multiple of 128 unless d == n (full array).
    Prefers a >=2-step grid (megacore) once blocks are reasonably lane-dense."""
    budget = 8 << 20

    def working_set(d):
        lanes = max(d * l, 128)
        return 16 * c_max * lanes * 4  # rough f32 live-activation footprint

    cands = [d for d in range(1, n + 1)
             if n % d == 0 and (d == n or (d * l) % 128 == 0)]
    fitting = [d for d in cands if working_set(d) <= budget] or [min(cands)]
    bt = max(fitting)
    for d in sorted(fitting, reverse=True):
        if n // d >= 2 and d * l >= 512:
            bt = d
            break
    return bt


def _pad2d_bytes(rows, cols, itemsize):
    """(sublane, 128)-padded VMEM footprint of a 2-D buffer."""
    sub = max(8, 32 // itemsize)
    return (-(-rows // sub) * sub) * (-(-cols // 128) * 128) * itemsize


@jax.jit
def residual_conv1d(x_ncl, w1, b1, w2, b2, w3, b3):
    """x_ncl: (N, C1, L); weights in PyTorch Conv1d layout (Cout, Cin, 3)."""
    N, C1, L = x_ncl.shape
    C2 = w1.shape[0]
    C3 = w3.shape[0]

    # Fold batch into the lane axis and drop to bf16 (one fused XLA pass):
    # (N, C1, L) -> (C1, N*L).  Lane axis = batch*seq -> lane-dense loads/stores.
    x = jnp.transpose(x_ncl, (1, 0, 2)).reshape(C1, N * L).astype(jnp.bfloat16)

    def flat_w(w):
        # (Cout, Cin, 3) -> (Cout, 3*Cin) with element [o, k*Cin + c] = w[o, c, k],
        # matching the [x_{l-1}; x_l; x_{l+1}] stacking order in the kernel.
        cout, cin, _ = w.shape
        return jnp.transpose(w, (0, 2, 1)).reshape(cout, 3 * cin).astype(jnp.bfloat16)

    w1k, w2k, w3k = flat_w(w1), flat_w(w2), flat_w(w3)
    b1k = b1.reshape(C2, 1).astype(jnp.float32)
    b2k = b2.reshape(C2, 1).astype(jnp.float32)
    b3k = b3.reshape(C3, 1).astype(jnp.float32)

    b_tile = _pick_batch_tile(N, L, max(C1, C2, C3))
    lanes = b_tile * L
    grid = (N // b_tile,)

    # VMEM budget: double-buffered in/out blocks + weights, plus live temporaries
    # (no double counting), capped at 48 MiB for v7x (64 MiB physical) headroom.
    blk = _pad2d_bytes(C1, lanes, 2) + _pad2d_bytes(C3, lanes, 4)
    wgt = (_pad2d_bytes(C2, 3 * C1, 2) + _pad2d_bytes(C2, 3 * C2, 2)
           + _pad2d_bytes(C3, 3 * C2, 2)
           + 2 * _pad2d_bytes(C2, 1, 4) + _pad2d_bytes(C3, 1, 4))
    tmp = (_pad2d_bytes(3 * C1, lanes, 4) + 2 * _pad2d_bytes(3 * C2, lanes, 4)
           + 3 * _pad2d_bytes(C2, lanes, 4) + 2 * _pad2d_bytes(C3, lanes, 4))
    est = 2 * (blk + wgt) + tmp + (4 << 20)
    vmem_limit = int(min(48 << 20, max(est, 32 << 20)))

    full = lambda r, c: pl.BlockSpec((r, c), lambda n: (0, 0))

    # TODO(synk): for very long L (block exceeds the VMEM budget, esp. v7x's
    # 64 MiB), add an L grid axis with a 1-column halo via manual DMA so the
    # working set is C * L_tile instead of the full folded lane axis.
    out_flat = pl.pallas_call(
        functools.partial(_residual_conv1d_kernel, seq_len=L),
        out_shape=jax.ShapeDtypeStruct((C3, N * L), jnp.float32),
        grid_spec=pltpu.PrefetchScalarGridSpec(
            num_scalar_prefetch=0,
            grid=grid,
            in_specs=[
                pl.BlockSpec((C1, lanes), lambda n: (0, n)),
                # Weight/bias index_maps are constant, so Pallas only fetches
                # them once (no per-step DMA), at the cost of one spare buffer.
                full(C2, 3 * C1), full(C2, 1),
                full(C2, 3 * C2), full(C2, 1),
                full(C3, 3 * C2), full(C3, 1),
            ],
            out_specs=pl.BlockSpec((C3, lanes), lambda n: (0, n)),
        ),
        compiler_params=pltpu.CompilerParams(
            dimension_semantics=("parallel",),
            vmem_limit_bytes=vmem_limit),
    )(x, w1k, b1k, w2k, b2k, w3k, b3k)

    # Back to the PyTorch NCL layout.
    return out_flat.reshape(C3, N, L).transpose(1, 0, 2)


# ----------------------------- reference (pure JAX, f32) -----------------------------
def _conv1d_ref(x_ncl, w, b):
    y = lax.conv_general_dilated(
        x_ncl, w, window_strides=(1,), padding=((1, 1),),
        dimension_numbers=("NCH", "OIH", "NCH"))
    return y + b[None, :, None]


def residual_conv1d_ref(x_ncl, w1, b1, w2, b2, w3, b3):
    out1 = jax.nn.relu(_conv1d_ref(x_ncl, w1, b1))
    out2 = jax.nn.relu(_conv1d_ref(out1, w2, b2)) + out1
    out3 = jax.nn.relu(_conv1d_ref(out2, w3, b3))
    return out3


if __name__ == "__main__":
    # Small, deterministic setup consistent with ResidualConv1D(dim_1, dim_2, dim_3).
    N, L = 2, 16
    dim_1, dim_2, dim_3 = 8, 16, 8
    key = jax.random.PRNGKey(0)
    kx, k1, k2, k3, k4, k5, k6 = jax.random.split(key, 7)

    def uinit(k, shape, fan_in):
        bound = 1.0 / jnp.sqrt(fan_in)
        return jax.random.uniform(k, shape, jnp.float32, -bound, bound)

    x = jax.random.normal(kx, (N, dim_1, L), jnp.float32)          # PyTorch NCL input
    w1 = uinit(k1, (dim_2, dim_1, 3), dim_1 * 3)
    b1 = uinit(k2, (dim_2,), dim_1 * 3)
    w2 = uinit(k3, (dim_2, dim_2, 3), dim_2 * 3)
    b2 = uinit(k4, (dim_2,), dim_2 * 3)
    w3 = uinit(k5, (dim_3, dim_2, 3), dim_2 * 3)
    b3 = uinit(k6, (dim_3,), dim_2 * 3)

    out = residual_conv1d(x, w1, b1, w2, b2, w3, b3)
    out = jax.block_until_ready(out)

    ref = residual_conv1d_ref(x, w1, b1, w2, b2, w3, b3)
    assert out.shape == (N, dim_3, L), out.shape
    # bf16 MXU inputs / f32 accumulation vs. an exact-f32 reference -> relaxed tol.
    max_err = float(jnp.max(jnp.abs(out - ref)))
    assert max_err < 3e-2, max_err
    print("KERNEL_OK")
</pallas_src>

<mosaic_0001>
module attributes {stable_mosaic.version = 11 : i64} {
  func.func @_residual_conv1d_kernel(%arg0: i32, %arg1: memref<8x32xbf16, #tpu.memory_space<vmem>>, %arg2: memref<16x24xbf16, #tpu.memory_space<vmem>>, %arg3: memref<16x1xf32, #tpu.memory_space<vmem>>, %arg4: memref<16x48xbf16, #tpu.memory_space<vmem>>, %arg5: memref<16x1xf32, #tpu.memory_space<vmem>>, %arg6: memref<8x48xbf16, #tpu.memory_space<vmem>>, %arg7: memref<8x1xf32, #tpu.memory_space<vmem>>, %arg8: memref<8x32xf32, #tpu.memory_space<vmem>>) attributes {dimension_semantics = [#tpu.dimension_semantics<parallel>], iteration_bounds = array<i64: 1>, scalar_prefetch = 0 : i64, scratch_operands = 0 : i64, tpu.core_type = #tpu.core_type<tc>, window_params = [{transform_indices = @transform_0, window_bounds = array<i64: 8, 32>}, {pipeline_mode = #tpu.pipeline_mode<synchronous>, transform_indices = @transform_1, window_bounds = array<i64: 16, 24>}, {pipeline_mode = #tpu.pipeline_mode<synchronous>, transform_indices = @transform_2, window_bounds = array<i64: 16, 1>}, {pipeline_mode = #tpu.pipeline_mode<synchronous>, transform_indices = @transform_3, window_bounds = array<i64: 16, 48>}, {pipeline_mode = #tpu.pipeline_mode<synchronous>, transform_indices = @transform_4, window_bounds = array<i64: 16, 1>}, {pipeline_mode = #tpu.pipeline_mode<synchronous>, transform_indices = @transform_5, window_bounds = array<i64: 8, 48>}, {pipeline_mode = #tpu.pipeline_mode<synchronous>, transform_indices = @transform_6, window_bounds = array<i64: 8, 1>}, {transform_indices = @transform_7, window_bounds = array<i64: 8, 32>}]} {
    %0 = tpu.iota {dimensions = array<i32: 1>} : vector<1x32xi32>
    %c16_i32 = arith.constant 16 : i32
    %c0_i32 = arith.constant 0 : i32
    %1 = arith.cmpi eq, %c16_i32, %c0_i32 : i32
    %c1_i32 = arith.constant 1 : i32
    %2 = arith.select %1, %c1_i32, %c16_i32 : i32
    %3 = vector.broadcast %2 : i32 to vector<1x32xi32>
    %4 = arith.remsi %0, %3 : vector<1x32xi32>
    %c0_i32_0 = arith.constant 0 : i32
    %5 = vector.broadcast %c0_i32_0 : i32 to vector<1x32xi32>
    %6 = arith.cmpi ne, %4, %5 : vector<1x32xi32>
    %c0_i32_1 = arith.constant 0 : i32
    %7 = vector.broadcast %c0_i32_1 : i32 to vector<1x32xi32>
    %8 = arith.cmpi slt, %4, %7 : vector<1x32xi32>
    %c0_i32_2 = arith.constant 0 : i32
    %9 = arith.cmpi slt, %2, %c0_i32_2 : i32
    %10 = vector.broadcast %9 : i1 to vector<1x32xi1>
    %11 = vector.broadcast %10 : vector<1x32xi1> to vector<1x32xi1>
    %12 = arith.xori %8, %11 : vector<1x32xi1>
    %13 = arith.andi %12, %6 : vector<1x32xi1>
    %14 = vector.broadcast %2 : i32 to vector<1x32xi32>
    %15 = arith.addi %4, %14 : vector<1x32xi32>
    %16 = arith.select %13, %15, %4 : vector<1x32xi1>, vector<1x32xi32>
    %c1_i32_3 = arith.constant 1 : i32
    %17 = vector.broadcast %c1_i32_3 : i32 to vector<1x32xi32>
    %18 = arith.cmpi sge, %16, %17 : vector<1x32xi32>
    %19 = arith.extui %18 : vector<1x32xi1> to vector<1x32xi32>
    %20 = arith.sitofp %19 : vector<1x32xi32> to vector<1x32xf32>
    %c14_i32 = arith.constant 14 : i32
    %21 = vector.broadcast %c14_i32 : i32 to vector<1x32xi32>
    %22 = arith.cmpi sle, %16, %21 : vector<1x32xi32>
    %23 = arith.extui %22 : vector<1x32xi1> to vector<1x32xi32>
    %24 = arith.sitofp %23 : vector<1x32xi32> to vector<1x32xf32>
    %c0 = arith.constant 0 : index
    %c0_4 = arith.constant 0 : index
    %25 = vector.load %arg1[%c0, %c0_4] : memref<8x32xbf16, #tpu.memory_space<vmem>>, vector<8x32xbf16>
    %26 = arith.extf %25 : vector<8x32xbf16> to vector<8x32xf32>
    %c1_i32_5 = arith.constant 1 : i32
    %27 = tpu.dynamic_rotate %26 by %c1_i32_5 dim 1 : vector<8x32xf32>, i32 -> vector<8x32xf32>
    %28 = vector.broadcast %20 : vector<1x32xf32> to vector<8x32xf32>
    %29 = arith.mulf %27, %28 : vector<8x32xf32>
    %c31_i32 = arith.constant 31 : i32
    %30 = tpu.dynamic_rotate %26 by %c31_i32 dim 1 : vector<8x32xf32>, i32 -> vector<8x32xf32>
    %31 = vector.broadcast %24 : vector<1x32xf32> to vector<8x32xf32>
    %32 = arith.mulf %30, %31 : vector<8x32xf32>
    %33 = tpu.concatenate %29, %26, %32 in 0 : vector<8x32xf32>, vector<8x32xf32>, vector<8x32xf32> -> vector<24x32xf32>
    %c0_6 = arith.constant 0 : index
    %c0_7 = arith.constant 0 : index
    %34 = vector.load %arg2[%c0_6, %c0_7] : memref<16x24xbf16, #tpu.memory_space<vmem>>, vector<16x24xbf16>
    %35 = arith.truncf %33 : vector<24x32xf32> to vector<24x32xbf16>
    %cst = arith.constant dense<0.000000e+00> : vector<16x32xf32>
    %36 = tpu.matmul %34, %35, %cst {dimension_numbers = #tpu.dot_dimension_numbers<[1], [0], [0], [1], [0, 0, 1, 1], [], []>} : vector<16x24xbf16>, vector<24x32xbf16>, vector<16x32xf32> -> vector<16x32xf32>
    %c0_8 = arith.constant 0 : index
    %c0_9 = arith.constant 0 : index
    %37 = vector.load %arg3[%c0_8, %c0_9] : memref<16x1xf32, #tpu.memory_space<vmem>>, vector<16x1xf32>
    %38 = vector.broadcast %37 : vector<16x1xf32> to vector<16x32xf32>
    %39 = arith.addf %36, %38 : vector<16x32xf32>
    %cst_10 = arith.constant 0.000000e+00 : f32
    %40 = vector.broadcast %cst_10 : f32 to vector<16x32xf32>
    %41 = arith.maximumf %39, %40 : vector<16x32xf32>
    %c1_i32_11 = arith.constant 1 : i32
    %42 = tpu.dynamic_rotate %41 by %c1_i32_11 dim 1 : vector<16x32xf32>, i32 -> vector<16x32xf32>
    %43 = vector.broadcast %20 : vector<1x32xf32> to vector<16x32xf32>
    %44 = arith.mulf %42, %43 : vector<16x32xf32>
    %c31_i32_12 = arith.constant 31 : i32
    %45 = tpu.dynamic_rotate %41 by %c31_i32_12 dim 1 : vector<16x32xf32>, i32 -> vector<16x32xf32>
    %46 = vector.broadcast %24 : vector<1x32xf32> to vector<16x32xf32>
    %47 = arith.mulf %45, %46 : vector<16x32xf32>
    %48 = tpu.concatenate %44, %41, %47 in 0 : vector<16x32xf32>, vector<16x32xf32>, vector<16x32xf32> -> vector<48x32xf32>
    %c0_13 = arith.constant 0 : index
    %c0_14 = arith.constant 0 : index
    %49 = vector.load %arg4[%c0_13, %c0_14] : memref<16x48xbf16, #tpu.memory_space<vmem>>, vector<16x48xbf16>
    %50 = arith.truncf %48 : vector<48x32xf32> to vector<48x32xbf16>
    %cst_15 = arith.constant dense<0.000000e+00> : vector<16x32xf32>
    %51 = tpu.matmul %49, %50, %cst_15 {dimension_numbers = #tpu.dot_dimension_numbers<[1], [0], [0], [1], [0, 0, 1, 1], [], []>} : vector<16x48xbf16>, vector<48x32xbf16>, vector<16x32xf32> -> vector<16x32xf32>
    %c0_16 = arith.constant 0 : index
    %c0_17 = arith.constant 0 : index
    %52 = vector.load %arg5[%c0_16, %c0_17] : memref<16x1xf32, #tpu.memory_space<vmem>>, vector<16x1xf32>
    %53 = vector.broadcast %52 : vector<16x1xf32> to vector<16x32xf32>
    %54 = arith.addf %51, %53 : vector<16x32xf32>
    %cst_18 = arith.constant 0.000000e+00 : f32
    %55 = vector.broadcast %cst_18 : f32 to vector<16x32xf32>
    %56 = arith.maximumf %54, %55 : vector<16x32xf32>
    %57 = arith.addf %56, %41 : vector<16x32xf32>
    %c1_i32_19 = arith.constant 1 : i32
    %58 = tpu.dynamic_rotate %57 by %c1_i32_19 dim 1 : vector<16x32xf32>, i32 -> vector<16x32xf32>
    %59 = vector.broadcast %20 : vector<1x32xf32> to vector<16x32xf32>
    %60 = arith.mulf %58, %59 : vector<16x32xf32>
    %c31_i32_20 = arith.constant 31 : i32
    %61 = tpu.dynamic_rotate %57 by %c31_i32_20 dim 1 : vector<16x32xf32>, i32 -> vector<16x32xf32>
    %62 = vector.broadcast %24 : vector<1x32xf32> to vector<16x32xf32>
    %63 = arith.mulf %61, %62 : vector<16x32xf32>
    %64 = tpu.concatenate %60, %57, %63 in 0 : vector<16x32xf32>, vector<16x32xf32>, vector<16x32xf32> -> vector<48x32xf32>
    %c0_21 = arith.constant 0 : index
    %c0_22 = arith.constant 0 : index
    %65 = vector.load %arg6[%c0_21, %c0_22] : memref<8x48xbf16, #tpu.memory_space<vmem>>, vector<8x48xbf16>
    %66 = arith.truncf %64 : vector<48x32xf32> to vector<48x32xbf16>
    %cst_23 = arith.constant dense<0.000000e+00> : vector<8x32xf32>
    %67 = tpu.matmul %65, %66, %cst_23 {dimension_numbers = #tpu.dot_dimension_numbers<[1], [0], [0], [1], [0, 0, 1, 1], [], []>} : vector<8x48xbf16>, vector<48x32xbf16>, vector<8x32xf32> -> vector<8x32xf32>
    %c0_24 = arith.constant 0 : index
    %c0_25 = arith.constant 0 : index
    %68 = vector.load %arg7[%c0_24, %c0_25] : memref<8x1xf32, #tpu.memory_space<vmem>>, vector<8x1xf32>
    %69 = vector.broadcast %68 : vector<8x1xf32> to vector<8x32xf32>
    %70 = arith.addf %67, %69 : vector<8x32xf32>
    %cst_26 = arith.constant 0.000000e+00 : f32
    %71 = vector.broadcast %cst_26 : f32 to vector<8x32xf32>
    %72 = arith.maximumf %70, %71 : vector<8x32xf32>
    %c0_27 = arith.constant 0 : index
    %c0_28 = arith.constant 0 : index
    %73 = vector.load %arg8[%c0_27, %c0_28] : memref<8x32xf32, #tpu.memory_space<vmem>>, vector<8x32xf32>
    tpu.vector_store %arg8[%c0_27, %c0_28], %72 {strides = array<i32>} : memref<8x32xf32, #tpu.memory_space<vmem>>, vector<8x32xf32>,
    return
  }
  func.func @transform_0(%arg0: i32) -> (i32, i32) {
    %c0_i32 = arith.constant 0 : i32
    %c0_i32_0 = arith.constant 0 : i32
    return %c0_i32, %arg0 : i32, i32
  }
  func.func @transform_1(%arg0: i32) -> (i32, i32) {
    %c0_i32 = arith.constant 0 : i32
    %c0_i32_0 = arith.constant 0 : i32
    %c0_i32_1 = arith.constant 0 : i32
    return %c0_i32, %c0_i32_0 : i32, i32
  }
  func.func @transform_2(%arg0: i32) -> (i32, i32) {
    %c0_i32 = arith.constant 0 : i32
    %c0_i32_0 = arith.constant 0 : i32
    %c0_i32_1 = arith.constant 0 : i32
    return %c0_i32, %c0_i32_0 : i32, i32
  }
  func.func @transform_3(%arg0: i32) -> (i32, i32) {
    %c0_i32 = arith.constant 0 : i32
    %c0_i32_0 = arith.constant 0 : i32
    %c0_i32_1 = arith.constant 0 : i32
    return %c0_i32, %c0_i32_0 : i32, i32
  }
  func.func @transform_4(%arg0: i32) -> (i32, i32) {
    %c0_i32 = arith.constant 0 : i32
    %c0_i32_0 = arith.constant 0 : i32
    %c0_i32_1 = arith.constant 0 : i32
    return %c0_i32, %c0_i32_0 : i32, i32
  }
  func.func @transform_5(%arg0: i32) -> (i32, i32) {
    %c0_i32 = arith.constant 0 : i32
    %c0_i32_0 = arith.constant 0 : i32
    %c0_i32_1 = arith.constant 0 : i32
    return %c0_i32, %c0_i32_0 : i32, i32
  }
  func.func @transform_6(%arg0: i32) -> (i32, i32) {
    %c0_i32 = arith.constant 0 : i32
    %c0_i32_0 = arith.constant 0 : i32
    %c0_i32_1 = arith.constant 0 : i32
    return %c0_i32, %c0_i32_0 : i32, i32
  }
  func.func @transform_7(%arg0: i32) -> (i32, i32) {
    %c0_i32 = arith.constant 0 : i32
    %c0_i32_0 = arith.constant 0 : i32
    return %c0_i32, %arg0 : i32, i32
  }
}

</mosaic_0001>

<llo_original>
// kernel: residual_conv1d.1
$region0: #{residual_conv1d.1}
  #allocation0 [shape = 'u32[]', space=smem, size = 0x4, offset = 0x4, fixed_abs, tag = 'smem constant byte address 0x4 - core index']
  #allocation1 [shape = 'u32[144,128]{1,0:T(1,128)}', space=vmem, size = 0x12000, scoped, tag = 'internal scratch']
  %s0 = inlined_call_operand.vmem [shape: bf16[8,32], index: 0, kind: input, shape index: {}]
  %s1 = inlined_call_operand.vmem [shape: bf16[16,24], index: 1, kind: input, shape index: {}]
  %s2 = inlined_call_operand.vmem [shape: f32[16,1], index: 2, kind: input, shape index: {}]
  %s3 = inlined_call_operand.vmem [shape: bf16[16,48], index: 3, kind: input, shape index: {}]
  %s4 = inlined_call_operand.vmem [shape: f32[16,1], index: 4, kind: input, shape index: {}]
  %s5 = inlined_call_operand.vmem [shape: bf16[8,48], index: 5, kind: input, shape index: {}]
  %s6 = inlined_call_operand.vmem [shape: f32[8,1], index: 6, kind: input, shape index: {}]
  %s7 = inlined_call_operand.vmem [shape: f32[8,32], index: 7, kind: output, shape index: {}]
  %s8 = sld [smem:[#allocation0]]
  $region38: #{residual_conv1d.1} parent=0
    _
  %s10 = ssub.s32 1, %s8
  %s11 = scalar_select 0, %s10, %s8
  // Predicated region
  $region2: #{residual_conv1d.1} parent=0 // pred_check
    _
  $region3: #{residual_conv1d.1} parent=0 // pred_check_branch
    %13 = sbr.rel (0) target = $region5
  $region4: #{residual_conv1d.1} parent=0 // pred_region
    _
  $region5: #{residual_conv1d.1} parent=0 // pred_fallthru
    _
  // Predicated region
  $region6: #{residual_conv1d.1} parent=0 // pred_check
    _
  $region7: #{residual_conv1d.1} parent=0 // pred_check_branch
    %15 = sbr.rel (0) target = $region9
  $region8: #{residual_conv1d.1} parent=0 // pred_region
    _
  $region9: #{residual_conv1d.1} parent=0 // pred_fallthru
    _
  // Predicated region
  $region10: #{residual_conv1d.1} parent=0 // pred_check
    _
  $region11: #{residual_conv1d.1} parent=0 // pred_check_branch
    %17 = sbr.rel (0) target = $region13
  $region12: #{residual_conv1d.1} parent=0 // pred_region
    _
  $region13: #{residual_conv1d.1} parent=0 // pred_fallthru
    _
  // Predicated region
  $region14: #{residual_conv1d.1} parent=0 // pred_check
    _
  $region15: #{residual_conv1d.1} parent=0 // pred_check_branch
    %19 = sbr.rel (0) target = $region17
  $region16: #{residual_conv1d.1} parent=0 // pred_region
    _
  $region17: #{residual_conv1d.1} parent=0 // pred_fallthru
    _
  // Predicated region
  $region18: #{residual_conv1d.1} parent=0 // pred_check
    _
  $region19: #{residual_conv1d.1} parent=0 // pred_check_branch
    %21 = sbr.rel (0) target = $region21
  $region20: #{residual_conv1d.1} parent=0 // pred_region
    _
  $region21: #{residual_conv1d.1} parent=0 // pred_fallthru
    _
  // Predicated region
  $region22: #{residual_conv1d.1} parent=0 // pred_check
    _
  $region23: #{residual_conv1d.1} parent=0 // pred_check_branch
    %23 = sbr.rel (0) target = $region25
  $region24: #{residual_conv1d.1} parent=0 // pred_region
    _
  $region25: #{residual_conv1d.1} parent=0 // pred_fallthru
    _
  // Predicated region
  $region26: #{residual_conv1d.1} parent=0 // pred_check
    _
  $region27: #{residual_conv1d.1} parent=0 // pred_check_branch
    %25 = sbr.rel (0) target = $region29
  $region28: #{residual_conv1d.1} parent=0 // pred_region
    _
  $region29: #{residual_conv1d.1} parent=0 // pred_fallthru
    _
  %v27 = vlaneseq
  %v28 = vand.u32 %v27, 127
  %vm29 = vcmp.lt.s32.totalorder %v28, 0
  %v30 = vsub.s32 0, %v28
  %v31 = vsel %vm29, %v30, %v28
  %v32 = vshrl.u32 %v31, 4
  %v33 = vand.u32 %v31, 15
  %v34 = vsub.s32 0, %v33
  %v35 = vsel %vm29, %v34, %v33
  %vm36 = vcmp.ne.s32.totalorder %v35, 0
  %vm37 = vcmp.lt.s32.totalorder %v35, 0
  %vm38 = vmand %vm37, %vm36
  %v39 = vadd.s32 %v35, 16
  %v40 = vsel %vm38, %v39, %v35
  %vm41 = vcmp.ge.s32.totalorder %v40, 1
  %v42 = vsel %vm41, 1, 0
  %v43 = vcvt.s32.f32 %v42
  %vm44 = vcmp.le.s32.totalorder %v40, 14
  %v45 = vsel %vm44, 1, 0
  %v46 = vcvt.s32.f32 %v45
  %v47 = vld [vmem:[%s0] sm:$0xf]
  %v48 = vunpack.c.l.bf16 %v47
  %vm49 = vcmask 1047808
  %50 = vrot.lane.b32.xlu0 %v48, 32
  %v51 = vpop.permute.xlu0 %50
  %v52 = vsel %vm49, %v51, %v48
  %53 = vrot.lane.b32.xlu0 %v52, 32
  %v54 = vpop.permute.xlu0 %53
  %v55 = vsel %vm49, %v54, %v48
  %57 = vrot.lane.b32.xlu0 %v43, 31
  %v58 = vpop.permute.xlu0 %57
  %v60 = vmul.f32 %v55, %v58
  %62 = vrot.lane.b32.xlu0 %v46, 1
  %v63 = vpop.permute.xlu0 %62
  %v65 = vmul.f32 %v55, %v63
  %67 = vrot.lane.b32.xlu0 %v48, 31
  %v68 = vpop.permute.xlu0 %67
  %71 = vrot.lane.b32.xlu0 %v65, 30
  %v72 = vpop.permute.xlu0 %71
  %v74 = vld [vmem:[%s1] sm:$0xf]
  %v75 = vld [vmem:[%s1 + $0x4] sm:$0xf]
  %v76 = vpack.c.bf16 %v68, %v60
  %v77 = vpack.c.bf16 %v72, %v72
  %v78 = vld [vmem:[%s2] sm:$0xff]
  %v79 = vld [vmem:[%s2 + $0x8] sm:$0xff]
  %81 = vset.pattern.permute.xlu0 0
  %82 = vperm.xlu0 %81, %v78
  %v83 = vpop.permute.xlu0 %82
  %86 = vset.pattern.permute.xlu0 0
  %87 = vperm.xlu0 %86, %v79
  %v88 = vpop.permute.xlu0 %87
  %v92 = vunpack.c.l.b16 %v74
  %v93 = vunpack.c.l.b16 %v75
  %v94 = vpack.c.b16 %v93, %v92
  %97 = vrot.lane.b32.xlu0 %v76, 97
  %v98 = vpop.permute.xlu0 %97
  %99 = vrot.lane.b32.xlu0 %v77, 97
  %v100 = vpop.permute.xlu0 %99
  %vm102 = vcmask 195584
  %v104 = vsel %vm102, %v94, 0
  %vm106 = vcmask 1043456
  %v108 = vsel %vm106, %v100, 0
  %110 = vmatprep.subr.bf16.mxu0 0
  %111 = vmatpush1.bf16.msra.mxu0 %v98
  %112 = vmatprep.subr.bf16.mxu0 0
  %113 = vmatpush1.bf16.msra.mxu0 %v108
  %114 = vmatprep.subr.bf16.mxu0 0
  %115 = vmatpush1.bf16.msra.mxu0 0
  %116 = vmatprep.subr.bf16.mxu0 0
  %117 = vmatpush1.bf16.msra.mxu0 0
  %118 = vmatprep.subr.bf16.mxu0 0
  %119 = vmatpush1.bf16.msra.mxu0 0
  %120 = vmatprep.subr.bf16.mxu0 0
  %121 = vmatpush1.bf16.msra.mxu0 0
  %122 = vmatprep.subr.bf16.mxu0 0
  %123 = vmatpush1.bf16.msra.mxu0 0
  %124 = vmatprep.subr.bf16.mxu0 0
  %125 = vmatpush1.bf16.msra.mxu0 0
  %126 = vmatprep.subr.bf16.mxu0 0
  %127 = vmatpush1.bf16.msra.mxu0 0
  %128 = vmatprep.subr.bf16.mxu0 0
  %129 = vmatpush1.bf16.msra.mxu0 0
  %130 = vmatprep.subr.bf16.mxu0 0
  %131 = vmatpush1.bf16.msra.mxu0 0
  %132 = vmatprep.subr.bf16.mxu0 0
  %133 = vmatpush1.bf16.msra.mxu0 0
  %134 = vmatprep.subr.bf16.mxu0 0
  %135 = vmatpush1.bf16.msra.mxu0 0
  %136 = vmatprep.subr.bf16.mxu0 0
  %137 = vmatpush1.bf16.msra.mxu0 0
  %138 = vmatprep.subr.bf16.mxu0 0
  %139 = vmatpush1.bf16.msra.mxu0 0
  %140 = vmatprep.subr.bf16.mxu0 0
  %141 = vmatpush1.bf16.msra.mxu0 0
  %142 = vmatprep.mubr.bf16.mxu0 0
  %143 = vmatmul.mubr.bf16.gmra.mrb[0].mxu0 %v104
  %v144 = vpop.f32.mrb[0].mxu0
  %v145 = vadd.f32 %v83, %v144
  %v146 = vpop.f32.mrb[0].mxu0
  %v147 = vpop.f32.mrb[0].mxu0
  %v148 = vadd.f32 %v88, %v147
  %v149 = vpop.f32.mrb[0].mxu0
  %150 = vdwg.mxu0
  %v151 = vmax.f32 %v145, 0.0
  %v152 = vmax.f32 %v148, 0.0
  %153 = vrot.lane.b32.xlu0 %v151, 32
  %v154 = vpop.permute.xlu0 %153
  %v155 = vsel %vm49, %v154, %v151
  %156 = vrot.lane.b32.xlu0 %v152, 32
  %v157 = vpop.permute.xlu0 %156
  %v158 = vsel %vm49, %v157, %v152
  %159 = vrot.lane.b32.xlu0 %v155, 32
  %v160 = vpop.permute.xlu0 %159
  %161 = vrot.lane.b32.xlu0 %v158, 32
  %v162 = vpop.permute.xlu0 %161
  %v163 = vsel %vm49, %v160, %v151
  %v164 = vsel %vm49, %v162, %v152
  %v165 = vmul.f32 %v163, %v58
  %v166 = vmul.f32 %v164, %v58
  %v167 = vmul.f32 %v163, %v63
  %v168 = vmul.f32 %v164, %v63
  %171 = vrot.lane.b32.xlu0 %v151, 31
  %v172 = vpop.permute.xlu0 %171
  %173 = vrot.lane.b32.xlu0 %v152, 31
  %v174 = vpop.permute.xlu0 %173
  %179 = vrot.lane.b32.xlu0 %v167, 30
  %v180 = vpop.permute.xlu0 %179
  %181 = vrot.lane.b32.xlu0 %v168, 30
  %v182 = vpop.permute.xlu0 %181
  %v185 = vld [vmem:[%s3] sm:$0xf]
  %v186 = vld [vmem:[%s3 + $0x4] sm:$0xf]
  %v187 = vpack.c.bf16 %v166, %v165
  %v188 = vpack.c.bf16 %v174, %v172
  %v189 = vpack.c.bf16 %v182, %v180
  %v190 = vld [vmem:[%s4] sm:$0xff]
  %v191 = vld [vmem:[%s4 + $0x8] sm:$0xff]
  %193 = vset.pattern.permute.xlu0 0
  %194 = vperm.xlu0 %193, %v190
  %v195 = vpop.permute.xlu0 %194
  %198 = vset.pattern.permute.xlu0 0
  %199 = vperm.xlu0 %198, %v191
  %v200 = vpop.permute.xlu0 %199
  %v204 = vunpack.c.l.b16 %v185
  %v205 = vunpack.c.l.b16 %v186
  %v206 = vpack.c.b16 %v205, %v204
  %210 = vrot.lane.b32.xlu0 %v187, 97
  %v211 = vpop.permute.xlu0 %210
  %212 = vrot.lane.b32.xlu0 %v188, 97
  %v213 = vpop.permute.xlu0 %212
  %214 = vrot.lane.b32.xlu0 %v189, 97
  %v215 = vpop.permute.xlu0 %214
  %vm219 = vcmask 392192
  %v221 = vsel %vm219, %v206, 0
  %223 = vmatprep.subr.bf16.mxu0 0
  %224 = vmatpush1.bf16.msra.mxu0 %v211
  %225 = vmatprep.subr.bf16.mxu0 0
  %226 = vmatpush1.bf16.msra.mxu0 %v213
  %227 = vmatprep.subr.bf16.mxu0 0
  %228 = vmatpush1.bf16.msra.mxu0 %v215
  %229 = vmatprep.subr.bf16.mxu0 0
  %230 = vmatpush1.bf16.msra.mxu0 0
  %231 = vmatprep.subr.bf16.mxu0 0
  %232 = vmatpush1.bf16.msra.mxu0 0
  %233 = vmatprep.subr.bf16.mxu0 0
  %234 = vmatpush1.bf16.msra.mxu0 0
  %235 = vmatprep.subr.bf16.mxu0 0
  %236 = vmatpush1.bf16.msra.mxu0 0
  %237 = vmatprep.subr.bf16.mxu0 0
  %238 = vmatpush1.bf16.msra.mxu0 0
  %239 = vmatprep.subr.bf16.mxu0 0
  %240 = vmatpush1.bf16.msra.mxu0 0
  %241 = vmatprep.subr.bf16.mxu0 0
  %242 = vmatpush1.bf16.msra.mxu0 0
  %243 = vmatprep.subr.bf16.mxu0 0
  %244 = vmatpush1.bf16.msra.mxu0 0
  %245 = vmatprep.subr.bf16.mxu0 0
  %246 = vmatpush1.bf16.msra.mxu0 0
  %247 = vmatprep.subr.bf16.mxu0 0
  %248 = vmatpush1.bf16.msra.mxu0 0
  %249 = vmatprep.subr.bf16.mxu0 0
  %250 = vmatpush1.bf16.msra.mxu0 0
  %251 = vmatprep.subr.bf16.mxu0 0
  %252 = vmatpush1.bf16.msra.mxu0 0
  %253 = vmatprep.subr.bf16.mxu0 0
  %254 = vmatpush1.bf16.msra.mxu0 0
  %255 = vmatprep.mubr.bf16.mxu0 0
  %256 = vmatmul.mubr.bf16.gmra.mrb[0].mxu0 %v221
  %v257 = vpop.f32.mrb[0].mxu0
  %v258 = vadd.f32 %v195, %v257
  %v259 = vpop.f32.mrb[0].mxu0
  %v260 = vpop.f32.mrb[0].mxu0
  %v261 = vadd.f32 %v200, %v260
  %v262 = vpop.f32.mrb[0].mxu0
  %263 = vdwg.mxu0
  %v264 = vmax.f32 %v258, 0.0
  %v265 = vmax.f32 %v261, 0.0
  %v266 = vadd.f32 %v264, %v151
  %v267 = vadd.f32 %v265, %v152
  %268 = vrot.lane.b32.xlu0 %v266, 32
  %v269 = vpop.permute.xlu0 %268
  %v270 = vsel %vm49, %v269, %v266
  %271 = vrot.lane.b32.xlu0 %v267, 32
  %v272 = vpop.permute.xlu0 %271
  %v273 = vsel %vm49, %v272, %v267
  %274 = vrot.lane.b32.xlu0 %v270, 32
  %v275 = vpop.permute.xlu0 %274
  %276 = vrot.lane.b32.xlu0 %v273, 32
  %v277 = vpop.permute.xlu0 %276
  %v278 = vsel %vm49, %v275, %v266
  %v279 = vsel %vm49, %v277, %v267
  %v280 = vmul.f32 %v278, %v58
  %v281 = vmul.f32 %v279, %v58
  %v282 = vmul.f32 %v278, %v63
  %v283 = vmul.f32 %v279, %v63
  %286 = vrot.lane.b32.xlu0 %v266, 31
  %v287 = vpop.permute.xlu0 %286
  %288 = vrot.lane.b32.xlu0 %v267, 31
  %v289 = vpop.permute.xlu0 %288
  %294 = vrot.lane.b32.xlu0 %v282, 30
  %v295 = vpop.permute.xlu0 %294
  %296 = vrot.lane.b32.xlu0 %v283, 30
  %v297 = vpop.permute.xlu0 %296
  %v300 = vld [vmem:[%s5] sm:$0xf]
  %v301 = vpack.c.bf16 %v281, %v280
  %v302 = vpack.c.bf16 %v289, %v287
  %v303 = vpack.c.bf16 %v297, %v295
  %v304 = vld [vmem:[%s6] sm:$0xff]
  %306 = vset.pattern.permute.xlu0 0
  %307 = vperm.xlu0 %306, %v304
  %v308 = vpop.permute.xlu0 %307
  %313 = vrot.lane.b32.xlu0 %v301, 97
  %v314 = vpop.permute.xlu0 %313
  %315 = vrot.lane.b32.xlu0 %v302, 97
  %v316 = vpop.permute.xlu0 %315
  %317 = vrot.lane.b32.xlu0 %v303, 97
  %v318 = vpop.permute.xlu0 %317
  %v323 = vsel %vm219, %v300, 0
  %325 = vmatprep.subr.bf16.mxu0 0
  %326 = vmatpush1.bf16.msra.mxu0 %v314
  %327 = vmatprep.subr.bf16.mxu0 0
  %328 = vmatpush1.bf16.msra.mxu0 %v316
  %329 = vmatprep.subr.bf16.mxu0 0
  %330 = vmatpush1.bf16.msra.mxu0 %v318
  %331 = vmatprep.subr.bf16.mxu0 0
  %332 = vmatpush1.bf16.msra.mxu0 0
  %333 = vmatprep.subr.bf16.mxu0 0
  %334 = vmatpush1.bf16.msra.mxu0 0
  %335 = vmatprep.subr.bf16.mxu0 0
  %336 = vmatpush1.bf16.msra.mxu0 0
  %337 = vmatprep.subr.bf16.mxu0 0
  %338 = vmatpush1.bf16.msra.mxu0 0
  %339 = vmatprep.subr.bf16.mxu0 0
  %340 = vmatpush1.bf16.msra.mxu0 0
  %341 = vmatprep.subr.bf16.mxu0 0
  %342 = vmatpush1.bf16.msra.mxu0 0
  %343 = vmatprep.subr.bf16.mxu0 0
  %344 = vmatpush1.bf16.msra.mxu0 0
  %345 = vmatprep.subr.bf16.mxu0 0
  %346 = vmatpush1.bf16.msra.mxu0 0
  %347 = vmatprep.subr.bf16.mxu0 0
  %348 = vmatpush1.bf16.msra.mxu0 0
  %349 = vmatprep.subr.bf16.mxu0 0
  %350 = vmatpush1.bf16.msra.mxu0 0
  %351 = vmatprep.subr.bf16.mxu0 0
  %352 = vmatpush1.bf16.msra.mxu0 0
  %353 = vmatprep.subr.bf16.mxu0 0
  %354 = vmatpush1.bf16.msra.mxu0 0
  %355 = vmatprep.subr.bf16.mxu0 0
  %356 = vmatpush1.bf16.msra.mxu0 0
  %357 = vmatprep.mubr.bf16.mxu0 0
  %358 = vmatmul.mubr.bf16.gmra.mrb[0].mxu0 %v323
  %v359 = vpop.f32.mrb[0].mxu0
  %v360 = vadd.f32 %v308, %v359
  %v361 = vpop.f32.mrb[0].mxu0
  %v362 = vpop.f32.mrb[0].mxu0
  %v363 = vpop.f32.mrb[0].mxu0
  %364 = vdwg.mxu0
  %v365 = vmax.f32 %v360, 0.0
  %vm366 = vcmask 261120
  %367 = vst.msk [vmem:[%s7] sm:$0xff] %vm366, %v365
  // Predicated region
  $region30: #{residual_conv1d.1} parent=0 // pred_check
    _
  $region31: #{residual_conv1d.1} parent=0 // pred_check_branch
    %369 = sbr.rel (0) target = $region33
  $region32: #{residual_conv1d.1} parent=0 // pred_region
    _
  $region33: #{residual_conv1d.1} parent=0 // pred_fallthru
    _
  // Predicated region
  $region34: #{residual_conv1d.1} parent=0 // pred_check
    _
  $region35: #{residual_conv1d.1} parent=0 // pred_check_branch
    %371 = sbr.rel (0) target = $region37
  $region36: #{residual_conv1d.1} parent=0 // pred_region
    _
  $region37: #{residual_conv1d.1} parent=0 // pred_fallthru
    _

</llo_original>
